<compile_context>
chip_gen: v7x
topology: tpu7x:2x2x1
jax: 0.10.0
libtpu: 0.0.40
codegen_flags: <defaults>
</compile_context>

<pallas_src>
import functools

import jax
import jax.numpy as jnp
from jax.experimental import pallas as pl
from jax.experimental.pallas import tpu as pltpu


# ---------------------------------------------------------------------------
# Kernel
# ---------------------------------------------------------------------------
def lstm_fc_kernel(x_ref, wg_ref, bg_ref, wfc_ref, bfc_ref, out_ref, *, hidden_dim):
    """Single-step LSTM (zero initial state) + Linear head, one-slab gate layout.

    x_ref   : (B, D)        input
    wg_ref  : (D, GW)       packed gate weights, one 128-lane slab [i | g | o | 0]
    bg_ref  : (1, GW)       packed fused bias (b_ih + b_hh), same slab layout
    wfc_ref : (GW, O_pad)   FC weight; rows [H:GW] and cols [O:O_pad] are exactly 0
    bfc_ref : (1, O_pad)    FC bias, cols [O:O_pad] exactly 0
    out_ref : (B, O_pad)    lane-dense (128-wide) output slab
    """
    GW = wg_ref.shape[1]          # lane-aligned slab width (128)
    H = hidden_dim                # live width of each gate inside the slab

    # gates = x @ W_packed + (b_ih + b_hh); the h0 @ W_hh^T term is exactly zero.
    # (astype is a no-op for f32 weights; with bf16 weights only the MXU operands
    #  narrow — accumulation and all elementwise math below stay f32.)
    gates = jnp.dot(x_ref[...].astype(wg_ref.dtype), wg_ref[...],
                    preferred_element_type=jnp.float32)
    gates = gates + bg_ref[...]                       # (B, GW) f32; pad lanes -> 0

    # One full-vreg EUP pass each over the single slab.
    sig = jax.nn.sigmoid(gates)      # i at lanes [0:H], o at [2H:3H]   (pads -> 0.5)
    tah = jnp.tanh(gates)            # g at lanes [H:2H]                (pads -> 0.0)

    # Lane-align g and o onto the i slab with XLU rotations (jnp.roll semantics:
    # element at lane l moves to lane l+shift, so shift = GW - k*H brings the k-th
    # slab down to lanes [0:H]).
    g_al = pltpu.roll(tah, shift=GW - H, axis=1)      # g -> lanes [0:H]
    o_al = pltpu.roll(sig, shift=GW - 2 * H, axis=1)  # o -> lanes [0:H]

    # Lanes [0:H] carry the real cell math; lanes [H:GW] carry finite garbage that
    # the zero FC rows [H:GW] annihilate.  Forget gate never computed: f*c0 == 0.
    c = sig * g_al                                    # i * g
    h = o_al * jnp.tanh(c)                            # o * tanh(c)

    out = jnp.dot(h.astype(wfc_ref.dtype), wfc_ref[...],
                  preferred_element_type=jnp.float32)
    out_ref[...] = (out + bfc_ref[...]).astype(out_ref.dtype)   # unmasked 128-lane store


# ---------------------------------------------------------------------------
# One-time parameter packing (module-init analogue; NOT on the per-call path)
# ---------------------------------------------------------------------------
def pack_params(w_ih, w_hh, b_ih, b_hh, w_fc, b_fc, *, weight_dtype=jnp.float32):
    """Pack PyTorch-layout LSTM/Linear params into the one-slab kernel layout.

    w_ih (4H, D), w_hh (4H, H), b_ih (4H,), b_hh (4H,), w_fc (O, H), b_fc (O,).
    Returns (w_gates (D, 128), b_gates (1, 128), w_fc_p (128, O_pad), b_fc_p (1, O_pad)).

    VALID ONLY for c0 = 0 and seq_len = 1 (the module forward guarantees both):
    the forget gate and the recurrent W_hh matmul contribute exactly zero and are
    dropped.  TODO(synk): reinstate W_hh, the forget gate and f*c_{t-1} if this is
    ever reused with nonzero initial state or T > 1.
    """
    del w_hh  # h0 = 0 -> recurrent matmul contributes exactly zero.

    four_h, D = w_ih.shape
    H = four_h // 4
    O = w_fc.shape[0]
    GW = 128                                    # single lane-aligned gate slab
    if 3 * H > GW:
        # TODO(synk): for H > 42 fall back to one 128*ceil(H/128)-lane slab per gate.
        raise NotImplementedError(
            f"one-slab gate packing needs 3*hidden_dim <= 128, got hidden_dim={H}")
    O_pad = ((O + 127) // 128) * 128            # lane-dense output slab

    bias = b_ih + b_hh                          # fold once, here (not per call)

    # PyTorch gate row order: [i, f, g, o]. f is dead (c0 = 0) and dropped entirely.
    live_gates = (0, 2, 3)                      # i, g, o -> slab lanes [0:H][H:2H][2H:3H]

    w_gates = jnp.zeros((D, GW), jnp.float32)
    b_gates = jnp.zeros((1, GW), jnp.float32)
    for slab, gidx in enumerate(live_gates):
        rows = slice(gidx * H, (gidx + 1) * H)
        w_gates = w_gates.at[:, slab * H:(slab + 1) * H].set(w_ih[rows].T)
        b_gates = b_gates.at[0, slab * H:(slab + 1) * H].set(bias[rows])

    # FC: rows [H:GW] and cols [O:O_pad] must be EXACTLY zero (kills garbage lanes
    # of h and keeps the padded output lanes at bias 0).
    w_fc_p = jnp.zeros((GW, O_pad), jnp.float32).at[:H, :O].set(w_fc.T)
    b_fc_p = jnp.zeros((1, O_pad), jnp.float32).at[0, :O].set(b_fc)

    # bf16 knob for v6e/v7x at real sizes (biases stay f32; elementwise stays f32).
    return (w_gates.astype(weight_dtype), b_gates,
            w_fc_p.astype(weight_dtype), b_fc_p)


# ---------------------------------------------------------------------------
# Forward (hot path): one gridless pallas_call, zero per-call weight re-layout
# ---------------------------------------------------------------------------
def lstm_forward(x, w_gates, b_gates, w_fc_p, b_fc_p, *, hidden_dim, output_dim):
    B = x.shape[0]
    O_pad = w_fc_p.shape[1]

    # v7x VMEM scaling guard: the gridless full-block design must fit comfortably in
    # scoped VMEM (v7x: 64 MiB physical / ~32 MiB default scoped — hit first).
    operand_bytes = sum(int(a.size) * a.dtype.itemsize
                        for a in (x, w_gates, b_gates, w_fc_p, b_fc_p))
    operand_bytes += B * O_pad * x.dtype.itemsize
    if operand_bytes > 16 * 1024 * 1024:
        raise ValueError(
            "gridless single-block LSTM kernel would need "
            f"{operand_bytes} bytes of VMEM; add a slab/K grid or raise "
            "vmem_limit_bytes via pltpu.CompilerParams before scaling this up.")

    vmem = pl.BlockSpec(memory_space=pltpu.MemorySpace.VMEM)
    out_padded = pl.pallas_call(
        functools.partial(lstm_fc_kernel, hidden_dim=hidden_dim),
        out_shape=jax.ShapeDtypeStruct((B, O_pad), x.dtype),
        in_specs=[vmem, vmem, vmem, vmem, vmem],
        out_specs=vmem,
    )(x, w_gates, b_gates, w_fc_p, b_fc_p)

    # Lane-dense (B, 128) slab inside the kernel; thin slice back to module shape.
    # A fused downstream consumer can take `out_padded` directly and skip this.
    return out_padded[:, :output_dim]


# ---------------------------------------------------------------------------
# Pure-JAX reference (matches PyTorch nn.LSTM single-step, h0=c0=0, + nn.Linear)
# ---------------------------------------------------------------------------
def _reference(x, w_ih, w_hh, b_ih, b_hh, w_fc, b_fc):
    del w_hh  # h0 = 0
    H = w_ih.shape[0] // 4
    gates = x @ w_ih.T + b_ih + b_hh
    i = jax.nn.sigmoid(gates[:, 0 * H:1 * H])
    g = jnp.tanh(gates[:, 2 * H:3 * H])
    o = jax.nn.sigmoid(gates[:, 3 * H:4 * H])
    c = i * g                                        # f * c0 == 0
    h = o * jnp.tanh(c)
    return h @ w_fc.T + b_fc


if __name__ == "__main__":
    B, D, H, O = 8, 16, 32, 8                        # batch, input_dim, hidden_dim, output_dim
    key = jax.random.PRNGKey(0)
    kx, k1, k2, k3, k4, k5, k6 = jax.random.split(key, 7)

    # PyTorch default init scales.
    s_lstm = 1.0 / jnp.sqrt(H)
    s_fc = 1.0 / jnp.sqrt(H)
    x = jax.random.normal(kx, (B, D), dtype=jnp.float32)
    w_ih = jax.random.uniform(k1, (4 * H, D), minval=-s_lstm, maxval=s_lstm, dtype=jnp.float32)
    w_hh = jax.random.uniform(k2, (4 * H, H), minval=-s_lstm, maxval=s_lstm, dtype=jnp.float32)
    b_ih = jax.random.uniform(k3, (4 * H,), minval=-s_lstm, maxval=s_lstm, dtype=jnp.float32)
    b_hh = jax.random.uniform(k4, (4 * H,), minval=-s_lstm, maxval=s_lstm, dtype=jnp.float32)
    w_fc = jax.random.uniform(k5, (O, H), minval=-s_fc, maxval=s_fc, dtype=jnp.float32)
    b_fc = jax.random.uniform(k6, (O,), minval=-s_fc, maxval=s_fc, dtype=jnp.float32)

    # One-time layout step (parameter storage), then a glue-free forward call.
    # (weight_dtype=jnp.bfloat16 is the v6e/v7x knob for real sizes; f32 here keeps
    #  exact parity with the f32 PyTorch module.)
    packed = pack_params(w_ih, w_hh, b_ih, b_hh, w_fc, b_fc)
    packed = jax.block_until_ready(packed)

    out = lstm_forward(x, *packed, hidden_dim=H, output_dim=O)
    out = jax.block_until_ready(out)

    ref = _reference(x, w_ih, w_hh, b_ih, b_hh, w_fc, b_fc)
    assert out.shape == (B, O)
    assert jnp.allclose(out, ref, atol=1e-5, rtol=1e-5)

    print("KERNEL_OK")
</pallas_src>

<mosaic_0001>
module attributes {stable_mosaic.version = 11 : i64} {
  func.func @lstm_fc_kernel(%arg0: memref<8x16xf32, #tpu.memory_space<vmem>>, %arg1: memref<16x128xf32, #tpu.memory_space<vmem>>, %arg2: memref<1x128xf32, #tpu.memory_space<vmem>>, %arg3: memref<128x128xf32, #tpu.memory_space<vmem>>, %arg4: memref<1x128xf32, #tpu.memory_space<vmem>>, %arg5: memref<8x128xf32, #tpu.memory_space<vmem>>) attributes {dimension_semantics = [], scalar_prefetch = 0 : i64, scratch_operands = 0 : i64, tpu.core_type = #tpu.core_type<tc>} {
    %c0 = arith.constant 0 : index
    %c0_0 = arith.constant 0 : index
    %0 = vector.load %arg0[%c0, %c0_0] : memref<8x16xf32, #tpu.memory_space<vmem>>, vector<8x16xf32>
    %c0_1 = arith.constant 0 : index
    %c0_2 = arith.constant 0 : index
    %1 = vector.load %arg1[%c0_1, %c0_2] : memref<16x128xf32, #tpu.memory_space<vmem>>, vector<16x128xf32>
    %cst = arith.constant dense<0.000000e+00> : vector<8x128xf32>
    %2 = tpu.matmul %0, %1, %cst {dimension_numbers = #tpu.dot_dimension_numbers<[1], [0], [0], [1], [0, 0, 1, 1], [], []>} : vector<8x16xf32>, vector<16x128xf32>, vector<8x128xf32> -> vector<8x128xf32>
    %c0_3 = arith.constant 0 : index
    %c0_4 = arith.constant 0 : index
    %3 = vector.load %arg2[%c0_3, %c0_4] : memref<1x128xf32, #tpu.memory_space<vmem>>, vector<1x128xf32>
    %4 = vector.broadcast %3 : vector<1x128xf32> to vector<8x128xf32>
    %5 = arith.addf %2, %4 : vector<8x128xf32>
    %6 = arith.negf %5 : vector<8x128xf32>
    %7 = math.exp %6 : vector<8x128xf32>
    %cst_5 = arith.constant 1.000000e+00 : f32
    %8 = vector.broadcast %cst_5 : f32 to vector<8x128xf32>
    %9 = arith.addf %8, %7 : vector<8x128xf32>
    %10 = arith.divf %8, %9 : vector<8x128xf32>
    %11 = math.tanh %5 : vector<8x128xf32>
    %c96_i32 = arith.constant 96 : i32
    %12 = tpu.dynamic_rotate %11 by %c96_i32 dim 1 : vector<8x128xf32>, i32 -> vector<8x128xf32>
    %c64_i32 = arith.constant 64 : i32
    %13 = tpu.dynamic_rotate %10 by %c64_i32 dim 1 : vector<8x128xf32>, i32 -> vector<8x128xf32>
    %14 = arith.mulf %10, %12 : vector<8x128xf32>
    %15 = math.tanh %14 : vector<8x128xf32>
    %16 = arith.mulf %13, %15 : vector<8x128xf32>
    %c0_6 = arith.constant 0 : index
    %c0_7 = arith.constant 0 : index
    %17 = vector.load %arg3[%c0_6, %c0_7] : memref<128x128xf32, #tpu.memory_space<vmem>>, vector<128x128xf32>
    %cst_8 = arith.constant dense<0.000000e+00> : vector<8x128xf32>
    %18 = tpu.matmul %16, %17, %cst_8 {dimension_numbers = #tpu.dot_dimension_numbers<[1], [0], [0], [1], [0, 0, 1, 1], [], []>} : vector<8x128xf32>, vector<128x128xf32>, vector<8x128xf32> -> vector<8x128xf32>
    %c0_9 = arith.constant 0 : index
    %c0_10 = arith.constant 0 : index
    %19 = vector.load %arg4[%c0_9, %c0_10] : memref<1x128xf32, #tpu.memory_space<vmem>>, vector<1x128xf32>
    %20 = vector.broadcast %19 : vector<1x128xf32> to vector<8x128xf32>
    %21 = arith.addf %18, %20 : vector<8x128xf32>
    %c0_11 = arith.constant 0 : index
    %c0_12 = arith.constant 0 : index
    %22 = vector.load %arg5[%c0_11, %c0_12] : memref<8x128xf32, #tpu.memory_space<vmem>>, vector<8x128xf32>
    tpu.vector_store %arg5[%c0_11, %c0_12], %21 {strides = array<i32>} : memref<8x128xf32, #tpu.memory_space<vmem>>, vector<8x128xf32>,
    return
  }
}

</mosaic_0001>

<llo_original>
// kernel: tpu_custom_call.1
$region0: #{tpu_custom_call.1}
  #allocation0 [shape = 'u32[]', space=smem, size = 0x4, offset = 0x4, fixed_abs, tag = 'smem constant byte address 0x4 - core index']
  #allocation1 [shape = 'u32[144,128]{1,0:T(1,128)}', space=vmem, size = 0x12000, scoped, tag = 'internal scratch']
  %s0 = inlined_call_operand.hbm [shape: f32[8,16], index: 0, kind: input, shape index: {}]
  %s1 = inlined_call_operand.hbm [shape: f32[16,128], index: 1, kind: input, shape index: {}]
  %s2 = inlined_call_operand.vmem [shape: f32[1,128], index: 2, kind: input, shape index: {}]
  %s3 = inlined_call_operand.hbm [shape: f32[128,128], index: 3, kind: input, shape index: {}]
  %s4 = inlined_call_operand.vmem [shape: f32[1,128], index: 4, kind: input, shape index: {}]
  %s5 = inlined_call_operand.hbm [shape: f32[8,128], index: 5, kind: output, shape index: {}]
  %s6 = sld [smem:[#allocation0]]
  $region42: #{tpu_custom_call.1} parent=0
    _
  %s8 = ssub.s32 1, %s6
  %s9 = scalar_select 0, %s8, %s6
  $region1: #{tpu_custom_call.1} parent=0
    #allocation2 [shape = 'u8[4096]{0}', space=vmem, size = 0x1000, scoped, tag = 'input window, operand 0, single buffered']
    #allocation3 [shape = 's32[1]{0}', space=sflag, size = 0x4, scoped, tag = 'scoped memory for tpu_custom_call.1']
    #allocation4 [shape = 's32[1]{0}', space=sflag, size = 0x4, scoped, tag = 'scoped memory for tpu_custom_call.1']
    #allocation5 [shape = 'u8[8192]{0}', space=vmem, size = 0x2000, scoped, tag = 'input window, operand 1, single buffered']
    #allocation6 [shape = 's32[1]{0}', space=sflag, size = 0x4, scoped, tag = 'scoped memory for tpu_custom_call.1']
    #allocation7 [shape = 'u8[65536]{0}', space=vmem, size = 0x10000, scoped, tag = 'input window, operand 3, single buffered']
    #allocation8 [shape = 'u8[4096]{0}', space=vmem, size = 0x1000, scoped, tag = 'output window, operand 0, single buffered']
    %10 = vsyncpa [#allocation3], 0
    %11 = vsyncpa [#allocation6], 0
    %12 = vsyncpa [#allocation4], 0
    // Predicated region
    $region2: #{tpu_custom_call.1} parent=1 // pred_check
      _
    $region3: #{tpu_custom_call.1} parent=1 // pred_check_branch
      %14 = sbr.rel (0) target = $region5
    $region4: #{tpu_custom_call.1} parent=1 // pred_region
      %s16 = ssub.s32 128, 128
      %17 = vsyncadd [#allocation3], %s16
      %s19 = sshll.u32 [#allocation2], 4
      %s20 = int_to_ptr.vmem [resolvable:$true] %s19
      %22 = dma.hbm_to_vmem [thread:$0]  %s0, 128, %s20, [#allocation3]
    $region5: #{tpu_custom_call.1} parent=1 // pred_fallthru
      _
    // Predicated region
    $region6: #{tpu_custom_call.1} parent=1 // pred_check
      _
    $region7: #{tpu_custom_call.1} parent=1 // pred_check_branch
      %24 = sbr.rel (0) target = $region9
    $region8: #{tpu_custom_call.1} parent=1 // pred_region
      %s26 = ssub.s32 256, 256
      %27 = vsyncadd [#allocation6], %s26
      %s28 = sshll.u32 [#allocation5], 4
      %s29 = int_to_ptr.vmem [resolvable:$true] %s28
      %34 = dma.hbm_to_vmem [thread:$0]  %s1, 256, %s29, [#allocation6], 128, 128, 8
    $region9: #{tpu_custom_call.1} parent=1 // pred_fallthru
      _
    // Predicated region
    $region10: #{tpu_custom_call.1} parent=1 // pred_check
      _
    $region11: #{tpu_custom_call.1} parent=1 // pred_check_branch
      %36 = sbr.rel (0) target = $region13
    $region12: #{tpu_custom_call.1} parent=1 // pred_region
      _
    $region13: #{tpu_custom_call.1} parent=1 // pred_fallthru
      _
    // Predicated region
    $region14: #{tpu_custom_call.1} parent=1 // pred_check
      _
    $region15: #{tpu_custom_call.1} parent=1 // pred_check_branch
      %38 = sbr.rel (0) target = $region17
    $region16: #{tpu_custom_call.1} parent=1 // pred_region
      %s40 = ssub.s32 2048, 2048
      %41 = vsyncadd [#allocation6], %s40
      %s42 = sshll.u32 [#allocation7], 4
      %s43 = int_to_ptr.vmem [resolvable:$true] %s42
      %48 = dma.hbm_to_vmem [thread:$0]  %s3, 2048, %s43, [#allocation6], 128, 128, 8
    $region17: #{tpu_custom_call.1} parent=1 // pred_fallthru
      _
    // Predicated region
    $region18: #{tpu_custom_call.1} parent=1 // pred_check
      _
    $region19: #{tpu_custom_call.1} parent=1 // pred_check_branch
      %50 = sbr.rel (0) target = $region21
    $region20: #{tpu_custom_call.1} parent=1 // pred_region
      _
    $region21: #{tpu_custom_call.1} parent=1 // pred_fallthru
      _
    // Predicated region
    $region22: #{tpu_custom_call.1} parent=1 // pred_check
      _
    $region23: #{tpu_custom_call.1} parent=1 // pred_check_branch
      %52 = sbr.rel (0) target = $region25
    $region24: #{tpu_custom_call.1} parent=1 // pred_region
      %53 = dma.done [#allocation3], 128
    $region25: #{tpu_custom_call.1} parent=1 // pred_fallthru
      _
    // Predicated region
    $region26: #{tpu_custom_call.1} parent=1 // pred_check
      _
    $region27: #{tpu_custom_call.1} parent=1 // pred_check_branch
      %55 = sbr.rel (0) target = $region29
    $region28: #{tpu_custom_call.1} parent=1 // pred_region
      %56 = dma.done [#allocation6], 256
    $region29: #{tpu_custom_call.1} parent=1 // pred_fallthru
      _
    // Predicated region
    $region30: #{tpu_custom_call.1} parent=1 // pred_check
      _
    $region31: #{tpu_custom_call.1} parent=1 // pred_check_branch
      %58 = sbr.rel (0) target = $region33
    $region32: #{tpu_custom_call.1} parent=1 // pred_region
      %59 = dma.done [#allocation6], 2048
    $region33: #{tpu_custom_call.1} parent=1 // pred_fallthru
      _
    %v60 = vld [vmem:[#allocation2] sm:$0xff]
    %v61 = vld [vmem:[#allocation5] sm:$0xff]
    %v62 = vld [vmem:[#allocation5 + $0x8] sm:$0xff]
    %v63 = vld [vmem:[%s2] sm:$0x1]
    %v65 = vlaneseq
    %v66 = vshrl.u32 %v65, 7
    %v67 = vsub.s32 0, %v66
    %v68 = vrot.slane %v63, %v67
    %vm70 = vcmask 130048
    %v72 = vsel %vm70, %v60, 0
    %74 = vmatprep.subr.mxu0 0.0
    %75 = vmatpush1.msra.mxu0 %v61
    %76 = vmatprep.subr.mxu0 0.0
    %77 = vmatpush1.msra.mxu0 %v62
    %78 = vmatprep.subr.mxu0 0.0
    %79 = vmatpush1.msra.mxu0 0.0
    %80 = vmatprep.subr.mxu0 0.0
    %81 = vmatpush1.msra.mxu0 0.0
    %82 = vmatprep.subr.mxu0 0.0
    %83 = vmatpush1.msra.mxu0 0.0
    %84 = vmatprep.subr.mxu0 0.0
    %85 = vmatpush1.msra.mxu0 0.0
    %86 = vmatprep.subr.mxu0 0.0
    %87 = vmatpush1.msra.mxu0 0.0
    %88 = vmatprep.subr.mxu0 0.0
    %89 = vmatpush1.msra.mxu0 0.0
    %90 = vmatprep.subr.mxu0 0.0
    %91 = vmatpush1.msra.mxu0 0.0
    %92 = vmatprep.subr.mxu0 0.0
    %93 = vmatpush1.msra.mxu0 0.0
    %94 = vmatprep.subr.mxu0 0.0
    %95 = vmatpush1.msra.mxu0 0.0
    %96 = vmatprep.subr.mxu0 0.0
    %97 = vmatpush1.msra.mxu0 0.0
    %98 = vmatprep.subr.mxu0 0.0
    %99 = vmatpush1.msra.mxu0 0.0
    %100 = vmatprep.subr.mxu0 0.0
    %101 = vmatpush1.msra.mxu0 0.0
    %102 = vmatprep.subr.mxu0 0.0
    %103 = vmatpush1.msra.mxu0 0.0
    %104 = vmatprep.subr.mxu0 0.0
    %105 = vmatpush1.msra.mxu0 0.0
    %106 = vmatprep.subr.mxu0 0.0
    %107 = vmatpush1.msra.mxu0 0.0
    %108 = vmatprep.subr.mxu0 0.0
    %109 = vmatpush1.msra.mxu0 0.0
    %110 = vmatprep.subr.mxu0 0.0
    %111 = vmatpush1.msra.mxu0 0.0
    %112 = vmatprep.subr.mxu0 0.0
    %113 = vmatpush1.msra.mxu0 0.0
    %114 = vmatprep.subr.mxu0 0.0
    %115 = vmatpush1.msra.mxu0 0.0
    %116 = vmatprep.subr.mxu0 0.0
    %117 = vmatpush1.msra.mxu0 0.0
    %118 = vmatprep.subr.mxu0 0.0
    %119 = vmatpush1.msra.mxu0 0.0
    %120 = vmatprep.subr.mxu0 0.0
    %121 = vmatpush1.msra.mxu0 0.0
    %122 = vmatprep.subr.mxu0 0.0
    %123 = vmatpush1.msra.mxu0 0.0
    %124 = vmatprep.subr.mxu0 0.0
    %125 = vmatpush1.msra.mxu0 0.0
    %126 = vmatprep.subr.mxu0 0.0
    %127 = vmatpush1.msra.mxu0 0.0
    %128 = vmatprep.subr.mxu0 0.0
    %129 = vmatpush1.msra.mxu0 0.0
    %130 = vmatprep.subr.mxu0 0.0
    %131 = vmatpush1.msra.mxu0 0.0
    %132 = vmatprep.subr.mxu0 0.0
    %133 = vmatpush1.msra.mxu0 0.0
    %134 = vmatprep.subr.mxu0 0.0
    %135 = vmatpush1.msra.mxu0 0.0
    %136 = vmatprep.subr.mxu0 0.0
    %137 = vmatpush1.msra.mxu0 0.0
    %138 = vmatprep.mubr.f32.mxu0 0.0
    %139 = vmatmul.mubr.f32.gmra.mrb[0].mxu0 %v72
    %v140 = vpop.f32.mrb[0].mxu0
    %v141 = vadd.f32 %v68, %v140
    %v142 = vpop.f32.mrb[0].mxu0
    %143 = vdwg.mxu0
    %v144 = vxor.u32 %v141, 2147483648
    %v145 = vmul.f32 %v144, 1.442695
    %v146 = vpow.pop %v145
    %v147 = vadd.f32 %v146, 1.0
    %v148 = vrcp.pop %v147
    %v149 = vmul.f32 1.0, %v148
    %v150 = vtanh.pop %v141
    %151 = vrot.lane.b32.xlu0 %v150, 96
    %v152 = vpop.permute.xlu0 %151
    %153 = vrot.lane.b32.xlu0 %v149, 64
    %v154 = vpop.permute.xlu0 %153
    %v155 = vmul.f32 %v149, %v152
    %v156 = vtanh.pop %v155
    %v157 = vmul.f32 %v154, %v156
    %v158 = vld [vmem:[#allocation7] sm:$0xff]
    %v159 = vld [vmem:[#allocation7 + $0x8] sm:$0xff]
    %v160 = vld [vmem:[#allocation7 + $0x10] sm:$0xff]
    %v161 = vld [vmem:[#allocation7 + $0x18] sm:$0xff]
    %v162 = vld [vmem:[#allocation7 + $0x20] sm:$0xff]
    %v163 = vld [vmem:[#allocation7 + $0x28] sm:$0xff]
    %v164 = vld [vmem:[#allocation7 + $0x30] sm:$0xff]
    %v165 = vld [vmem:[#allocation7 + $0x38] sm:$0xff]
    %v166 = vld [vmem:[#allocation7 + $0x40] sm:$0xff]
    %v167 = vld [vmem:[#allocation7 + $0x48] sm:$0xff]
    %v168 = vld [vmem:[#allocation7 + $0x50] sm:$0xff]
    %v169 = vld [vmem:[#allocation7 + $0x58] sm:$0xff]
    %v170 = vld [vmem:[#allocation7 + $0x60] sm:$0xff]
    %v171 = vld [vmem:[#allocation7 + $0x68] sm:$0xff]
    %v172 = vld [vmem:[#allocation7 + $0x70] sm:$0xff]
    %v173 = vld [vmem:[#allocation7 + $0x78] sm:$0xff]
    %v174 = vld [vmem:[%s4] sm:$0x1]
    %v176 = vlaneseq
    %v177 = vshrl.u32 %v176, 7
    %v178 = vsub.s32 0, %v177
    %v179 = vrot.slane %v174, %v178
    %181 = vmatprep.subr.mxu0 0.0
    %182 = vmatpush1.msra.mxu0 %v158
    %183 = vmatprep.subr.mxu0 0.0
    %184 = vmatpush1.msra.mxu0 %v159
    %185 = vmatprep.subr.mxu0 0.0
    %186 = vmatpush1.msra.mxu0 %v160
    %187 = vmatprep.subr.mxu0 0.0
    %188 = vmatpush1.msra.mxu0 %v161
    %189 = vmatprep.subr.mxu0 0.0
    %190 = vmatpush1.msra.mxu0 %v162
    %191 = vmatprep.subr.mxu0 0.0
    %192 = vmatpush1.msra.mxu0 %v163
    %193 = vmatprep.subr.mxu0 0.0
    %194 = vmatpush1.msra.mxu0 %v164
    %195 = vmatprep.subr.mxu0 0.0
    %196 = vmatpush1.msra.mxu0 %v165
    %197 = vmatprep.subr.mxu0 0.0
    %198 = vmatpush1.msra.mxu0 %v166
    %199 = vmatprep.subr.mxu0 0.0
    %200 = vmatpush1.msra.mxu0 %v167
    %201 = vmatprep.subr.mxu0 0.0
    %202 = vmatpush1.msra.mxu0 %v168
    %203 = vmatprep.subr.mxu0 0.0
    %204 = vmatpush1.msra.mxu0 %v169
    %205 = vmatprep.subr.mxu0 0.0
    %206 = vmatpush1.msra.mxu0 %v170
    %207 = vmatprep.subr.mxu0 0.0
    %208 = vmatpush1.msra.mxu0 %v171
    %209 = vmatprep.subr.mxu0 0.0
    %210 = vmatpush1.msra.mxu0 %v172
    %211 = vmatprep.subr.mxu0 0.0
    %212 = vmatpush1.msra.mxu0 %v173
    %213 = vmatprep.subr.mxu0 0.0
    %214 = vmatpush1.msra.mxu0 0.0
    %215 = vmatprep.subr.mxu0 0.0
    %216 = vmatpush1.msra.mxu0 0.0
    %217 = vmatprep.subr.mxu0 0.0
    %218 = vmatpush1.msra.mxu0 0.0
    %219 = vmatprep.subr.mxu0 0.0
    %220 = vmatpush1.msra.mxu0 0.0
    %221 = vmatprep.subr.mxu0 0.0
    %222 = vmatpush1.msra.mxu0 0.0
    %223 = vmatprep.subr.mxu0 0.0
    %224 = vmatpush1.msra.mxu0 0.0
    %225 = vmatprep.subr.mxu0 0.0
    %226 = vmatpush1.msra.mxu0 0.0
    %227 = vmatprep.subr.mxu0 0.0
    %228 = vmatpush1.msra.mxu0 0.0
    %229 = vmatprep.subr.mxu0 0.0
    %230 = vmatpush1.msra.mxu0 0.0
    %231 = vmatprep.subr.mxu0 0.0
    %232 = vmatpush1.msra.mxu0 0.0
    %233 = vmatprep.subr.mxu0 0.0
    %234 = vmatpush1.msra.mxu0 0.0
    %235 = vmatprep.subr.mxu0 0.0
    %236 = vmatpush1.msra.mxu0 0.0
    %237 = vmatprep.subr.mxu0 0.0
    %238 = vmatpush1.msra.mxu0 0.0
    %239 = vmatprep.subr.mxu0 0.0
    %240 = vmatpush1.msra.mxu0 0.0
    %241 = vmatprep.subr.mxu0 0.0
    %242 = vmatpush1.msra.mxu0 0.0
    %243 = vmatprep.subr.mxu0 0.0
    %244 = vmatpush1.msra.mxu0 0.0
    %245 = vmatprep.mubr.f32.mxu0 0.0
    %246 = vmatmul.mubr.f32.gmra.mrb[0].mxu0 %v157
    %v247 = vpop.f32.mrb[0].mxu0
    %v248 = vadd.f32 %v179, %v247
    %v249 = vpop.f32.mrb[0].mxu0
    %250 = vdwg.mxu0
    %251 = vst [vmem:[#allocation8] sm:$0xff] %v248
    // Predicated region
    $region34: #{tpu_custom_call.1} parent=1 // pred_check
      _
    $region35: #{tpu_custom_call.1} parent=1 // pred_check_branch
      %253 = sbr.rel (0) target = $region37
    $region36: #{tpu_custom_call.1} parent=1 // pred_region
      %s255 = ssub.s32 128, 128
      %256 = vsyncadd [#allocation4], %s255
      %s258 = sshll.u32 [#allocation8], 4
      %s259 = int_to_ptr.vmem [resolvable:$true] %s258
      %261 = dma.vmem_to_hbm [thread:$0]  %s259, 128, %s5, [#allocation4]
    $region37: #{tpu_custom_call.1} parent=1 // pred_fallthru
      _
    // Predicated region
    $region38: #{tpu_custom_call.1} parent=1 // pred_check
      _
    $region39: #{tpu_custom_call.1} parent=1 // pred_check_branch
      %263 = sbr.rel (0) target = $region41
    $region40: #{tpu_custom_call.1} parent=1 // pred_region
      %264 = dma.done [#allocation4], 128
    $region41: #{tpu_custom_call.1} parent=1 // pred_fallthru
      _
    %265 = vsyncpa [#allocation3], 1
    %266 = vsyncpa [#allocation6], 1
    %267 = vsyncpa [#allocation4], 1

</llo_original>
